<compile_context>
chip_gen: v6e
topology: v6e:2x2x1
jax: 0.10.0
libtpu: 0.0.40
codegen_flags: <defaults>
</compile_context>

<pallas_src>
import functools

import jax
import jax.numpy as jnp
from jax.experimental import pallas as pl
from jax.experimental.pallas import tpu as pltpu


def _ncc_kernel(i_ref, j_ref, out_ref, *, tb, h, w, w_pad, pad, win_size, eps):
    rows = tb * h
    I = i_ref[...].reshape(rows, w).astype(jnp.float32)
    J = j_ref[...].reshape(rows, w).astype(jnp.float32)

    # Band-of-ones matrices (|i-j| <= pad), generated on the VPU — cheap
    # O(H^2 + W^2) work, avoids DMA-ing constants from HBM.
    def band(n):
        r = jax.lax.broadcasted_iota(jnp.int32, (n, n), 0)
        c = jax.lax.broadcasted_iota(jnp.int32, (n, n), 1)
        return (jnp.abs(r - c) <= pad).astype(jnp.float32)

    kh = band(h)                                   # (H, H)
    kw = band(w)                                   # (W, W)
    # Broadcast hoisted once per grid step (only needed for the batched dot).
    kh_b = None if tb == 1 else jnp.broadcast_to(kh.reshape(1, h, h), (tb, h, h))

    def box_sum(x_flat):                           # (tb*H, W) f32 -> (tb*H, W)
        if tb == 1:
            t = jnp.dot(kh, x_flat, preferred_element_type=jnp.float32)
        else:
            # H contraction per image, batched over tb (no cross-image mixing,
            # no structural zeros).
            t = jax.lax.dot_general(
                kh_b, x_flat.reshape(tb, h, w),
                dimension_numbers=(((2,), (1,)), ((0,), (0,))),
                preferred_element_type=jnp.float32).reshape(rows, w)
        # W contraction: one flat 2-D dot for all images in the block.
        return jnp.dot(t, kw, preferred_element_type=jnp.float32)

    I_sum = box_sum(I)
    J_sum = box_sum(J)
    I2_sum = box_sum(I * I)
    J2_sum = box_sum(J * J)
    IJ_sum = box_sum(I * J)

    inv_win = 1.0 / win_size
    u_I = I_sum * inv_win
    u_J = J_sum * inv_win
    # NOTE: win_size is the constant k*k even at image borders — intentional
    # parity with the PyTorch mask=None path (torch.sum(filt)); do not "fix".
    cross = IJ_sum - u_J * I_sum - u_I * J_sum + u_I * u_J * win_size
    I_var = I2_sum - 2.0 * u_I * I_sum + u_I * u_I * win_size
    J_var = J2_sum - 2.0 * u_J * J_sum + u_J * u_J * win_size
    # Exact divide kept (not approx reciprocal) to preserve reference-level
    # accuracy; the epilogue is not the binding unit here.
    cc = cross * cross / (I_var * J_var + eps)

    # Per-block partial: reduce sublanes only, keep the (lane-dense, padded)
    # lane axis.  Final cross-lane reduce + (-1/N) scaling live in the wrapper.
    part = jnp.sum(cc, axis=0, keepdims=True)      # (1, W)
    if w_pad > w:
        part = jnp.concatenate(
            [part, jnp.zeros((1, w_pad - w), jnp.float32)], axis=1)
    out_ref[...] = part.reshape(1, 1, w_pad)


def ncc_loss(prediction, target, *, kernel_size=9, eps=1e-5):
    """Pallas NCC loss. prediction/target: NCHW, C must be 1 (mean kernel)."""
    B, C, H, W = prediction.shape
    assert C == 1, "mean-kernel NCC (filter [1,1,k,k]) requires a single channel"

    pad = kernel_size // 2
    I = prediction.reshape(B, H, W)   # keep original dtype; cast in-kernel
    J = target.reshape(B, H, W)

    in_bytes = jnp.dtype(prediction.dtype).itemsize
    # W-aware VMEM budget: 2 inputs x 2 pipeline buffers + ~12 live f32
    # working arrays per image.  ~10 MiB target stays well under every
    # generation's scoped default (16 MiB v5e / 32 MiB v6e,v7x) and v7x's
    # 64 MiB physical per-TC VMEM.
    per_img = H * W * (2 * 2 * in_bytes + 12 * 4)
    tb_vmem = max(1, (10 << 20) // max(per_img, 1))
    tb_cores = max(1, -(-B // 2))     # keep nb >= 2 so v7x uses both TCs
    tb = int(max(1, min(B, tb_vmem, tb_cores)))
    nb = -(-B // tb)                  # ceil(B / tb)
    b_pad = nb * tb
    if b_pad != B:
        # Zero-padded extra images contribute exactly cc == 0 (cross == 0).
        zp = ((0, b_pad - B), (0, 0), (0, 0))
        I = jnp.pad(I, zp)
        J = jnp.pad(J, zp)

    w_pad = ((W + 127) // 128) * 128  # lane-dense partial-output width

    win_size = float(kernel_size * kernel_size)     # torch.sum(filt) = 81
    kernel = functools.partial(_ncc_kernel, tb=tb, h=H, w=W, w_pad=w_pad,
                               pad=pad, win_size=win_size, eps=eps)

    # Explicit scoped-VMEM budget (v5e default is only 16 MiB).
    est = (2 * 2 * tb * H * W * in_bytes            # double-buffered inputs
           + 12 * tb * H * W * 4                    # f32 working arrays
           + (tb + 1) * H * H * 4 + W * W * 4       # band matrices (+bcast)
           + 2 * w_pad * 4)                         # output buffers
    vmem_limit = int(min(max(2 * est, 16 << 20), 48 << 20))

    partials = pl.pallas_call(
        kernel,
        out_shape=jax.ShapeDtypeStruct((nb, 1, w_pad), jnp.float32),
        grid_spec=pltpu.PrefetchScalarGridSpec(
            num_scalar_prefetch=0,
            grid=(nb,),
            in_specs=[
                pl.BlockSpec((tb, H, W), lambda b: (b, 0, 0)),
                pl.BlockSpec((tb, H, W), lambda b: (b, 0, 0)),
            ],
            out_specs=pl.BlockSpec((1, 1, w_pad), lambda b: (b, 0, 0)),
        ),
        compiler_params=pltpu.CompilerParams(
            dimension_semantics=("parallel",),      # disjoint per-block outputs
            vmem_limit_bytes=vmem_limit),
    )(I, J)

    # loss = -mean(cc) over all B*C*H*W elements (batch padding and lane
    # padding both contribute exactly 0 to the sum).
    return -jnp.sum(partials) / float(B * C * H * W)


def _ref_loss(I, J, kernel_size=9, eps=1e-5):
    """Pure-JAX reference matching the PyTorch forward (mask=None)."""
    filt = jnp.ones((1, 1, kernel_size, kernel_size), jnp.float32)
    pad = kernel_size // 2
    conv = lambda x: jax.lax.conv_general_dilated(
        x, filt, (1, 1), [(pad, pad), (pad, pad)],
        dimension_numbers=("NCHW", "OIHW", "NCHW"))
    I_sum, J_sum = conv(I), conv(J)
    I2_sum, J2_sum, IJ_sum = conv(I * I), conv(J * J), conv(I * J)
    win = float(kernel_size * kernel_size)
    u_I, u_J = I_sum / win, J_sum / win
    cross = IJ_sum - u_J * I_sum - u_I * J_sum + u_I * u_J * win
    I_var = I2_sum - 2 * u_I * I_sum + u_I * u_I * win
    J_var = J2_sum - 2 * u_J * J_sum + u_J * u_J * win
    cc = cross * cross / (I_var * J_var + eps)
    return -jnp.mean(cc)


if __name__ == "__main__":
    key = jax.random.PRNGKey(0)
    k1, k2, k3, k4 = jax.random.split(key, 4)

    # Primary small example consistent with the module's NCHW forward
    # (single-channel mean-kernel path): exercises tb == 1, nb == 2.
    B, C, H, W = 2, 1, 16, 16
    prediction = jax.random.normal(k1, (B, C, H, W), jnp.float32)
    target = jax.random.normal(k2, (B, C, H, W), jnp.float32)
    loss = jax.block_until_ready(ncc_loss(prediction, target))
    ref = jax.block_until_ready(_ref_loss(prediction, target))
    assert jnp.allclose(loss, ref, rtol=1e-4, atol=1e-5), (loss, ref)

    # Also exercise the multi-image-per-block (tb > 1, batched-dot) path.
    B2 = 8
    prediction2 = jax.random.normal(k3, (B2, 1, 16, 16), jnp.float32)
    target2 = jax.random.normal(k4, (B2, 1, 16, 16), jnp.float32)
    loss2 = jax.block_until_ready(ncc_loss(prediction2, target2))
    ref2 = jax.block_until_ready(_ref_loss(prediction2, target2))
    assert jnp.allclose(loss2, ref2, rtol=1e-4, atol=1e-5), (loss2, ref2)

    print("KERNEL_OK")
</pallas_src>

<mosaic_0001>
module attributes {stable_mosaic.version = 11 : i64} {
  func.func @_ncc_kernel(%arg0: i32, %arg1: memref<1x16x16xf32, #tpu.memory_space<vmem>>, %arg2: memref<1x16x16xf32, #tpu.memory_space<vmem>>, %arg3: memref<1x1x128xf32, #tpu.memory_space<vmem>>) attributes {dimension_semantics = [#tpu.dimension_semantics<parallel>], iteration_bounds = array<i64: 2>, scalar_prefetch = 0 : i64, scratch_operands = 0 : i64, tpu.core_type = #tpu.core_type<tc>, window_params = [{transform_indices = @transform_0, window_bounds = array<i64: 1, 16, 16>}, {transform_indices = @transform_1, window_bounds = array<i64: 1, 16, 16>}, {transform_indices = @transform_2, window_bounds = array<i64: 1, 1, 128>}]} {
    %c0 = arith.constant 0 : index
    %c0_0 = arith.constant 0 : index
    %c0_1 = arith.constant 0 : index
    %0 = vector.load %arg1[%c0, %c0_0, %c0_1] : memref<1x16x16xf32, #tpu.memory_space<vmem>>, vector<1x16x16xf32>
    %1 = vector.shape_cast %0 : vector<1x16x16xf32> to vector<16x16xf32>
    %c0_2 = arith.constant 0 : index
    %c0_3 = arith.constant 0 : index
    %c0_4 = arith.constant 0 : index
    %2 = vector.load %arg2[%c0_2, %c0_3, %c0_4] : memref<1x16x16xf32, #tpu.memory_space<vmem>>, vector<1x16x16xf32>
    %3 = vector.shape_cast %2 : vector<1x16x16xf32> to vector<16x16xf32>
    %4 = tpu.iota {dimensions = array<i32: 0>} : vector<16x16xi32>
    %5 = tpu.iota {dimensions = array<i32: 1>} : vector<16x16xi32>
    %6 = arith.subi %4, %5 : vector<16x16xi32>
    %7 = math.absi %6 : vector<16x16xi32>
    %c4_i32 = arith.constant 4 : i32
    %8 = vector.broadcast %c4_i32 : i32 to vector<16x16xi32>
    %9 = arith.cmpi sle, %7, %8 : vector<16x16xi32>
    %10 = arith.extui %9 : vector<16x16xi1> to vector<16x16xi32>
    %11 = arith.sitofp %10 : vector<16x16xi32> to vector<16x16xf32>
    %12 = tpu.iota {dimensions = array<i32: 0>} : vector<16x16xi32>
    %13 = tpu.iota {dimensions = array<i32: 1>} : vector<16x16xi32>
    %14 = arith.subi %12, %13 : vector<16x16xi32>
    %15 = math.absi %14 : vector<16x16xi32>
    %c4_i32_5 = arith.constant 4 : i32
    %16 = vector.broadcast %c4_i32_5 : i32 to vector<16x16xi32>
    %17 = arith.cmpi sle, %15, %16 : vector<16x16xi32>
    %18 = arith.extui %17 : vector<16x16xi1> to vector<16x16xi32>
    %19 = arith.sitofp %18 : vector<16x16xi32> to vector<16x16xf32>
    %cst = arith.constant dense<0.000000e+00> : vector<16x16xf32>
    %20 = tpu.matmul %11, %1, %cst {dimension_numbers = #tpu.dot_dimension_numbers<[1], [0], [0], [1], [0, 0, 1, 1], [], []>} : vector<16x16xf32>, vector<16x16xf32>, vector<16x16xf32> -> vector<16x16xf32>
    %cst_6 = arith.constant dense<0.000000e+00> : vector<16x16xf32>
    %21 = tpu.matmul %20, %19, %cst_6 {dimension_numbers = #tpu.dot_dimension_numbers<[1], [0], [0], [1], [0, 0, 1, 1], [], []>} : vector<16x16xf32>, vector<16x16xf32>, vector<16x16xf32> -> vector<16x16xf32>
    %cst_7 = arith.constant dense<0.000000e+00> : vector<16x16xf32>
    %22 = tpu.matmul %11, %3, %cst_7 {dimension_numbers = #tpu.dot_dimension_numbers<[1], [0], [0], [1], [0, 0, 1, 1], [], []>} : vector<16x16xf32>, vector<16x16xf32>, vector<16x16xf32> -> vector<16x16xf32>
    %cst_8 = arith.constant dense<0.000000e+00> : vector<16x16xf32>
    %23 = tpu.matmul %22, %19, %cst_8 {dimension_numbers = #tpu.dot_dimension_numbers<[1], [0], [0], [1], [0, 0, 1, 1], [], []>} : vector<16x16xf32>, vector<16x16xf32>, vector<16x16xf32> -> vector<16x16xf32>
    %24 = arith.mulf %1, %1 : vector<16x16xf32>
    %cst_9 = arith.constant dense<0.000000e+00> : vector<16x16xf32>
    %25 = tpu.matmul %11, %24, %cst_9 {dimension_numbers = #tpu.dot_dimension_numbers<[1], [0], [0], [1], [0, 0, 1, 1], [], []>} : vector<16x16xf32>, vector<16x16xf32>, vector<16x16xf32> -> vector<16x16xf32>
    %cst_10 = arith.constant dense<0.000000e+00> : vector<16x16xf32>
    %26 = tpu.matmul %25, %19, %cst_10 {dimension_numbers = #tpu.dot_dimension_numbers<[1], [0], [0], [1], [0, 0, 1, 1], [], []>} : vector<16x16xf32>, vector<16x16xf32>, vector<16x16xf32> -> vector<16x16xf32>
    %27 = arith.mulf %3, %3 : vector<16x16xf32>
    %cst_11 = arith.constant dense<0.000000e+00> : vector<16x16xf32>
    %28 = tpu.matmul %11, %27, %cst_11 {dimension_numbers = #tpu.dot_dimension_numbers<[1], [0], [0], [1], [0, 0, 1, 1], [], []>} : vector<16x16xf32>, vector<16x16xf32>, vector<16x16xf32> -> vector<16x16xf32>
    %cst_12 = arith.constant dense<0.000000e+00> : vector<16x16xf32>
    %29 = tpu.matmul %28, %19, %cst_12 {dimension_numbers = #tpu.dot_dimension_numbers<[1], [0], [0], [1], [0, 0, 1, 1], [], []>} : vector<16x16xf32>, vector<16x16xf32>, vector<16x16xf32> -> vector<16x16xf32>
    %30 = arith.mulf %1, %3 : vector<16x16xf32>
    %cst_13 = arith.constant dense<0.000000e+00> : vector<16x16xf32>
    %31 = tpu.matmul %11, %30, %cst_13 {dimension_numbers = #tpu.dot_dimension_numbers<[1], [0], [0], [1], [0, 0, 1, 1], [], []>} : vector<16x16xf32>, vector<16x16xf32>, vector<16x16xf32> -> vector<16x16xf32>
    %cst_14 = arith.constant dense<0.000000e+00> : vector<16x16xf32>
    %32 = tpu.matmul %31, %19, %cst_14 {dimension_numbers = #tpu.dot_dimension_numbers<[1], [0], [0], [1], [0, 0, 1, 1], [], []>} : vector<16x16xf32>, vector<16x16xf32>, vector<16x16xf32> -> vector<16x16xf32>
    %cst_15 = arith.constant 0.0123456791 : f32
    %33 = vector.broadcast %cst_15 : f32 to vector<16x16xf32>
    %34 = arith.mulf %21, %33 : vector<16x16xf32>
    %cst_16 = arith.constant 0.0123456791 : f32
    %35 = vector.broadcast %cst_16 : f32 to vector<16x16xf32>
    %36 = arith.mulf %23, %35 : vector<16x16xf32>
    %37 = arith.mulf %36, %21 : vector<16x16xf32>
    %38 = arith.subf %32, %37 : vector<16x16xf32>
    %39 = arith.mulf %34, %23 : vector<16x16xf32>
    %40 = arith.subf %38, %39 : vector<16x16xf32>
    %41 = arith.mulf %34, %36 : vector<16x16xf32>
    %cst_17 = arith.constant 8.100000e+01 : f32
    %42 = vector.broadcast %cst_17 : f32 to vector<16x16xf32>
    %43 = arith.mulf %41, %42 : vector<16x16xf32>
    %44 = arith.addf %40, %43 : vector<16x16xf32>
    %cst_18 = arith.constant 2.000000e+00 : f32
    %45 = vector.broadcast %cst_18 : f32 to vector<16x16xf32>
    %46 = arith.mulf %45, %34 : vector<16x16xf32>
    %47 = arith.mulf %46, %21 : vector<16x16xf32>
    %48 = arith.subf %26, %47 : vector<16x16xf32>
    %49 = arith.mulf %34, %34 : vector<16x16xf32>
    %cst_19 = arith.constant 8.100000e+01 : f32
    %50 = vector.broadcast %cst_19 : f32 to vector<16x16xf32>
    %51 = arith.mulf %49, %50 : vector<16x16xf32>
    %52 = arith.addf %48, %51 : vector<16x16xf32>
    %cst_20 = arith.constant 2.000000e+00 : f32
    %53 = vector.broadcast %cst_20 : f32 to vector<16x16xf32>
    %54 = arith.mulf %53, %36 : vector<16x16xf32>
    %55 = arith.mulf %54, %23 : vector<16x16xf32>
    %56 = arith.subf %29, %55 : vector<16x16xf32>
    %57 = arith.mulf %36, %36 : vector<16x16xf32>
    %cst_21 = arith.constant 8.100000e+01 : f32
    %58 = vector.broadcast %cst_21 : f32 to vector<16x16xf32>
    %59 = arith.mulf %57, %58 : vector<16x16xf32>
    %60 = arith.addf %56, %59 : vector<16x16xf32>
    %61 = arith.mulf %44, %44 : vector<16x16xf32>
    %62 = arith.mulf %52, %60 : vector<16x16xf32>
    %cst_22 = arith.constant 9.99999974E-6 : f32
    %63 = vector.broadcast %cst_22 : f32 to vector<16x16xf32>
    %64 = arith.addf %62, %63 : vector<16x16xf32>
    %65 = arith.divf %61, %64 : vector<16x16xf32>
    %cst_23 = arith.constant dense<0.000000e+00> : vector<16xf32>
    %66 = vector.multi_reduction <add>, %65, %cst_23 [0] : vector<16x16xf32> to vector<16xf32>
    %67 = vector.shape_cast %66 : vector<16xf32> to vector<1x16xf32>
    %cst_24 = arith.constant 0.000000e+00 : f32
    %68 = vector.broadcast %cst_24 : f32 to vector<1x112xf32>
    %69 = tpu.concatenate %67, %68 in 1 : vector<1x16xf32>, vector<1x112xf32> -> vector<1x128xf32>
    %70 = vector.shape_cast %69 : vector<1x128xf32> to vector<1x1x128xf32>
    %c0_25 = arith.constant 0 : index
    %c0_26 = arith.constant 0 : index
    %c0_27 = arith.constant 0 : index
    %71 = vector.load %arg3[%c0_25, %c0_26, %c0_27] : memref<1x1x128xf32, #tpu.memory_space<vmem>>, vector<1x1x128xf32>
    tpu.vector_store %arg3[%c0_25, %c0_26, %c0_27], %70 {strides = array<i32>} : memref<1x1x128xf32, #tpu.memory_space<vmem>>, vector<1x1x128xf32>,
    return
  }
  func.func @transform_0(%arg0: i32) -> (i32, i32, i32) {
    %c0_i32 = arith.constant 0 : i32
    %c0_i32_0 = arith.constant 0 : i32
    %c0_i32_1 = arith.constant 0 : i32
    return %arg0, %c0_i32, %c0_i32_0 : i32, i32, i32
  }
  func.func @transform_1(%arg0: i32) -> (i32, i32, i32) {
    %c0_i32 = arith.constant 0 : i32
    %c0_i32_0 = arith.constant 0 : i32
    %c0_i32_1 = arith.constant 0 : i32
    return %arg0, %c0_i32, %c0_i32_0 : i32, i32, i32
  }
  func.func @transform_2(%arg0: i32) -> (i32, i32, i32) {
    %c0_i32 = arith.constant 0 : i32
    %c0_i32_0 = arith.constant 0 : i32
    %c0_i32_1 = arith.constant 0 : i32
    return %arg0, %c0_i32, %c0_i32_0 : i32, i32, i32
  }
}

</mosaic_0001>

<llo_original>
// kernel: tpu_custom_call.1
$region0: #{tpu_custom_call.1}
  #allocation0 [shape = 'u32[]', space=smem, size = 0x4, offset = 0x4, fixed_abs, tag = 'smem constant byte address 0x4 - core index']
  #allocation1 [shape = 'u32[144,128]{1,0:T(1,128)}', space=vmem, size = 0x12000, scoped, tag = 'internal scratch']
  %s0 = inlined_call_operand.hbm [shape: f32[2,16,16], index: 0, kind: input, shape index: {}]
  %s1 = inlined_call_operand.hbm [shape: f32[2,16,16], index: 1, kind: input, shape index: {}]
  %s2 = inlined_call_operand.hbm [shape: f32[2,1,128], index: 2, kind: output, shape index: {}]
  %s3 = sld [smem:[#allocation0]]
  $region49: #{tpu_custom_call.1} parent=0
    _
  %s5 = ssub.s32 1, %s3
  %s6 = scalar_select 0, %s5, %s3
  $region1: #{tpu_custom_call.1} parent=0
    #allocation2 [shape = 'u8[16384]{0}', space=vmem, size = 0x4000, scoped, tag = 'input window, operand 0']
    #allocation3 [shape = 's32[2]{0}', space=sflag, size = 0x8, scoped, tag = 'scoped memory for tpu_custom_call.1']
    #allocation4 [shape = 's32[2]{0}', space=sflag, size = 0x8, scoped, tag = 'scoped memory for tpu_custom_call.1']
    #allocation5 [shape = 'u8[16384]{0}', space=vmem, size = 0x4000, scoped, tag = 'input window, operand 1']
    #allocation6 [shape = 's32[2]{0}', space=sflag, size = 0x8, scoped, tag = 'scoped memory for tpu_custom_call.1']
    #allocation7 [shape = 'u8[1024]{0}', space=vmem, size = 0x400, scoped, tag = 'output window, operand 0']
    %7 = vsyncpa [#allocation3], 0
    %s8 = scalar_lea.sflag [#allocation3], 1
    %9 = vsyncpa %s8, 0
    %10 = vsyncpa [#allocation6], 0
    %s11 = scalar_lea.sflag [#allocation6], 1
    %12 = vsyncpa %s11, 0
    %13 = vsyncpa [#allocation4], 0
    %s14 = scalar_lea.sflag [#allocation4], 1
    %15 = vsyncpa %s14, 0
    loop: start=0, step=1, limit=4
    $region2: #{tpu_custom_call.1} parent=1 // loop_pre_header
      _
    $region3: #{tpu_custom_call.1} parent=1 // loop_header
      %s17 = sphi 0, %s21
      %p18 = scmp.ge.s32.totalorder %s17, 4
      %s27 = sphi 0, %s29
      %s30 = sphi 0, %s27
      %s31 = sphi 0, %s30
      %s47 = sphi 0, %s31
      %s53 = sphi 0, %s55
      %s56 = sphi 0, %s53
      %s57 = sphi 0, %s56
      %s73 = sphi 0, %s57
      %s79 = sphi 0, %s81
      %s82 = sphi 0, %s79
      %s83 = sphi 0, %s82
      %s99 = sphi 0, %s83
    $region4: #{tpu_custom_call.1} parent=1 // loop_header_branch
      %20 = sbr.rel (%p18) target = $region8
    $region5: #{tpu_custom_call.1} parent=1 // loop_body
      %s22 = ssub.s32 %s17, 1
      %s23 = ssub.s32 %s17, 2
      %s24 = sadd.s32 %s17, 1
      %s25 = ssub.s32 %s17, %s24
      %p26 = scmp.eq.s32.totalorder %s25, 0
      %s28 = sadd.s32 %s27, 1
      %s29 = scalar_select %p26, %s27, %s28
      %p32 = pneg %p26
      %p33 = scmp.eq.s32.totalorder %s17, 1
      %p34 = por %p32, %p33
      %p35 = scmp.ne.s32.totalorder %s27, %s30
      %p36 = scmp.eq.s32.totalorder %s17, 0
      %p37 = por %p35, %p36
      %p38 = scmp.ne.s32.totalorder %s27, %s30
      %p39 = scmp.eq.s32.totalorder %s22, 1
      %p40 = por %p38, %p39
      %p41 = scmp.ne.s32.totalorder %s30, %s31
      %p42 = scmp.eq.s32.totalorder %s22, 0
      %p43 = por %p41, %p42
      %p44 = scmp.ne.s32.totalorder %s30, %s31
      %p45 = scmp.eq.s32.totalorder %s23, 1
      %p46 = por %p44, %p45
      %p48 = scmp.ne.s32.totalorder %s31, %s47
      %p49 = scmp.eq.s32.totalorder %s23, 0
      %p50 = por %p48, %p49
      %s51 = ssub.s32 %s17, %s24
      %p52 = scmp.eq.s32.totalorder %s51, 0
      %s54 = sadd.s32 %s53, 1
      %s55 = scalar_select %p52, %s53, %s54
      %p58 = pneg %p52
      %p59 = scmp.eq.s32.totalorder %s17, 1
      %p60 = por %p58, %p59
      %p61 = scmp.ne.s32.totalorder %s53, %s56
      %p62 = scmp.eq.s32.totalorder %s17, 0
      %p63 = por %p61, %p62
      %p64 = scmp.ne.s32.totalorder %s53, %s56
      %p65 = scmp.eq.s32.totalorder %s22, 1
      %p66 = por %p64, %p65
      %p67 = scmp.ne.s32.totalorder %s56, %s57
      %p68 = scmp.eq.s32.totalorder %s22, 0
      %p69 = por %p67, %p68
      %p70 = scmp.ne.s32.totalorder %s56, %s57
      %p71 = scmp.eq.s32.totalorder %s23, 1
      %p72 = por %p70, %p71
      %p74 = scmp.ne.s32.totalorder %s57, %s73
      %p75 = scmp.eq.s32.totalorder %s23, 0
      %p76 = por %p74, %p75
      %s77 = ssub.s32 %s17, %s24
      %p78 = scmp.eq.s32.totalorder %s77, 0
      %s80 = sadd.s32 %s79, 1
      %s81 = scalar_select %p78, %s79, %s80
      %p84 = pneg %p78
      %p85 = scmp.eq.s32.totalorder %s17, 1
      %p86 = por %p84, %p85
      %p87 = scmp.ne.s32.totalorder %s79, %s82
      %p88 = scmp.eq.s32.totalorder %s17, 0
      %p89 = por %p87, %p88
      %p90 = scmp.ne.s32.totalorder %s79, %s82
      %p91 = scmp.eq.s32.totalorder %s22, 1
      %p92 = por %p90, %p91
      %p93 = scmp.ne.s32.totalorder %s82, %s83
      %p94 = scmp.eq.s32.totalorder %s22, 0
      %p95 = por %p93, %p94
      %p96 = scmp.ne.s32.totalorder %s82, %s83
      %p97 = scmp.eq.s32.totalorder %s23, 1
      %p98 = por %p96, %p97
      %p100 = scmp.ne.s32.totalorder %s83, %s99
      %p101 = scmp.eq.s32.totalorder %s23, 0
      %p102 = por %p100, %p101
      %p103 = scmp.le.s32.totalorder 1, %s17
      %p104 = scmp.lt.s32.totalorder %s17, 3
      %p105 = pnand %p103, %p104
      %p106 = pneg %p105
      // Predicated region
      $region9: #{tpu_custom_call.1} parent=5 // pred_check
        _
      $region10: #{tpu_custom_call.1} parent=5 // pred_check_branch
        %108 = sbr.rel (%p105) target = $region12
      $region11: #{tpu_custom_call.1} parent=5 // pred_region
        %s109 = ssub.s32 %s17, 1
      $region12: #{tpu_custom_call.1} parent=5 // pred_fallthru
        _
      %p110 = scmp.lt.s32.totalorder %s17, 2
      // Predicated region
      $region13: #{tpu_custom_call.1} parent=5 // pred_check
        %p111 = pneg %p110
      $region14: #{tpu_custom_call.1} parent=5 // pred_check_branch
        %113 = sbr.rel (%p111) target = $region16
      $region15: #{tpu_custom_call.1} parent=5 // pred_region
        // Predicated region
        $region17: #{tpu_custom_call.1} parent=15 // pred_check
          %p114 = pneg %p37
        $region18: #{tpu_custom_call.1} parent=15 // pred_check_branch
          %116 = sbr.rel (%p114) target = $region20
        $region19: #{tpu_custom_call.1} parent=15 // pred_region
          %s117 = sand.u32 %s27, 1
          %s118 = scalar_lea.sflag [#allocation3], %s117
          %s119 = sand.u32 %s27, 1
          %s120 = smul.addr %s119, 16
          %s121 = scalar_lea.vmem [#allocation2], %s120
          %s123 = ssub.s32 256, 256
          %124 = vsyncadd %s118, %s123
          %s125 = smul.addr %s17, 2
          %s126 = smul.addr %s125, 128
          %s127 = scalar_lea.hbm %s0, %s126
          %s128 = sshll.u32 %s121, 4
          %s129 = int_to_ptr.vmem [resolvable:$true] %s128
          %134 = dma.hbm_to_vmem [thread:$0]  %s127, 256, %s129, %s118, 128, 128, 8
        $region20: #{tpu_custom_call.1} parent=15 // pred_fallthru
          _
        // Predicated region
        $region21: #{tpu_custom_call.1} parent=15 // pred_check
          %p135 = pneg %p63
        $region22: #{tpu_custom_call.1} parent=15 // pred_check_branch
          %137 = sbr.rel (%p135) target = $region24
        $region23: #{tpu_custom_call.1} parent=15 // pred_region
          %s138 = sand.u32 %s53, 1
          %s139 = scalar_lea.sflag [#allocation6], %s138
          %s140 = sand.u32 %s53, 1
          %s141 = smul.addr %s140, 16
          %s142 = scalar_lea.vmem [#allocation5], %s141
          %s144 = ssub.s32 256, 256
          %145 = vsyncadd %s139, %s144
          %s146 = smul.addr %s17, 2
          %s147 = smul.addr %s146, 128
          %s148 = scalar_lea.hbm %s1, %s147
          %s149 = sshll.u32 %s142, 4
          %s150 = int_to_ptr.vmem [resolvable:$true] %s149
          %155 = dma.hbm_to_vmem [thread:$0]  %s148, 256, %s150, %s139, 128, 128, 8
        $region24: #{tpu_custom_call.1} parent=15 // pred_fallthru
          _
      $region16: #{tpu_custom_call.1} parent=5 // pred_fallthru
        _
      %p156 = scmp.le.s32.totalorder 1, %s17
      %p157 = scmp.lt.s32.totalorder %s17, 3
      %p158 = pnand %p156, %p157
      %p159 = pneg %p158
      // Predicated region
      $region25: #{tpu_custom_call.1} parent=5 // pred_check
        _
      $region26: #{tpu_custom_call.1} parent=5 // pred_check_branch
        %161 = sbr.rel (%p158) target = $region28
      $region27: #{tpu_custom_call.1} parent=5 // pred_region
        %s162 = ssub.s32 %s17, 1
        %s163 = sand.u32 %s30, 1
        %s164 = scalar_lea.sflag [#allocation3], %s163
        %s165 = sand.u32 %s30, 1
        %s166 = smul.addr %s165, 16
        %s167 = scalar_lea.vmem [#allocation2], %s166
        // Predicated region
        $region29: #{tpu_custom_call.1} parent=27 // pred_check
          %p168 = pneg %p43
        $region30: #{tpu_custom_call.1} parent=27 // pred_check_branch
          %170 = sbr.rel (%p168) target = $region32
        $region31: #{tpu_custom_call.1} parent=27 // pred_region
          %171 = dma.done %s164, 256
        $region32: #{tpu_custom_call.1} parent=27 // pred_fallthru
          _
        %s172 = sand.u32 %s56, 1
        %s173 = scalar_lea.sflag [#allocation6], %s172
        %s174 = sand.u32 %s56, 1
        %s175 = smul.addr %s174, 16
        %s176 = scalar_lea.vmem [#allocation5], %s175
        // Predicated region
        $region33: #{tpu_custom_call.1} parent=27 // pred_check
          %p177 = pneg %p69
        $region34: #{tpu_custom_call.1} parent=27 // pred_check_branch
          %179 = sbr.rel (%p177) target = $region36
        $region35: #{tpu_custom_call.1} parent=27 // pred_region
          %180 = dma.done %s173, 256
        $region36: #{tpu_custom_call.1} parent=27 // pred_fallthru
          _
        %s181 = sand.u32 %s30, 1
        %s182 = scalar_lea.sflag [#allocation3], %s181
        %s183 = sand.u32 %s30, 1
        %s184 = smul.addr %s183, 16
        %s185 = scalar_lea.vmem [#allocation2], %s184
        %p186 = pneg %p43
        %p187 = pneg %p40
        %s188 = sand.u32 %s56, 1
        %s189 = scalar_lea.sflag [#allocation6], %s188
        %s190 = sand.u32 %s56, 1
        %s191 = smul.addr %s190, 16
        %s192 = scalar_lea.vmem [#allocation5], %s191
        %p193 = pneg %p69
        %p194 = pneg %p66
        %p195 = pneg %p95
        %p196 = pneg %p92
        %s197 = sand.u32 %s82, 1
        %s198 = scalar_lea.sflag [#allocation4], %s197
        %s199 = sand.u32 %s82, 1
        %s200 = scalar_lea.vmem [#allocation7], %s199
        %v201 = vld [vmem:[%s167] sm:$0xff]
        %v202 = vld [vmem:[%s167 + $0x8] sm:$0xff]
        %v203 = vld [vmem:[%s176] sm:$0xff]
        %v204 = vld [vmem:[%s176 + $0x8] sm:$0xff]
        %v205 = vlaneseq
        %v206 = vshrl.u32 %v205, 7
        %v207 = vadd.s32 %v206, 8
        %v208 = vlaneseq
        %v209 = vand.u32 %v208, 127
        %v210 = vsub.s32 %v206, %v209
        %v211 = vsub.s32 %v207, %v209
        %vm212 = vcmp.lt.s32.totalorder %v210, 0
        %v213 = vsub.s32 0, %v210
        %v214 = vsel %vm212, %v213, %v210
        %vm215 = vcmp.lt.s32.totalorder %v211, 0
        %v216 = vsub.s32 0, %v211
        %v217 = vsel %vm215, %v216, %v211
        %vm218 = vcmp.le.s32.totalorder %v214, 4
        %vm219 = vcmp.le.s32.totalorder %v217, 4
        %v220 = vsel %vm218, 1, 0
        %v221 = vsel %vm219, 1, 0
        %v222 = vcvt.s32.f32 %v220
        %v223 = vcvt.s32.f32 %v221
        %vm224 = vcmask 130048
        %v226 = vsel %vm224, %v222, 0
        %v229 = vsel %vm224, %v223, 0
        %231 = vmatprep.subr.mxu0 0.0
        %232 = vmatpush1.msra.mxu0 0.0
        %233 = vmatprep.subr.mxu0 0.0
        %234 = vmatpush1.msra.mxu0 0.0
        %235 = vmatprep.subr.mxu0 0.0
        %236 = vmatpush1.msra.mxu0 0.0
        %237 = vmatprep.subr.mxu0 0.0
        %238 = vmatpush1.msra.mxu0 0.0
        %239 = vmatprep.subr.mxu0 0.0
        %240 = vmatpush1.msra.mxu0 0.0
        %241 = vmatprep.subr.mxu0 0.0
        %242 = vmatpush1.msra.mxu0 0.0
        %243 = vmatprep.subr.mxu0 0.0
        %244 = vmatpush1.msra.mxu0 0.0
        %245 = vmatprep.subr.mxu0 0.0
        %246 = vmatpush1.msra.mxu0 0.0
        %247 = vmatprep.subr.mxu0 0.0
        %248 = vmatpush1.msra.mxu0 0.0
        %249 = vmatprep.subr.mxu0 0.0
        %250 = vmatpush1.msra.mxu0 0.0
        %251 = vmatprep.subr.mxu0 0.0
        %252 = vmatpush1.msra.mxu0 0.0
        %253 = vmatprep.subr.mxu0 0.0
        %254 = vmatpush1.msra.mxu0 0.0
        %255 = vmatprep.subr.mxu0 0.0
        %256 = vmatpush1.msra.mxu0 0.0
        %257 = vmatprep.subr.mxu0 0.0
        %258 = vmatpush1.msra.mxu0 0.0
        %259 = vmatprep.subr.mxu0 0.0
        %260 = vmatpush1.msra.mxu0 %v202
        %261 = vmatprep.subr.mxu0 0.0
        %262 = vmatpush1.msra.mxu0 %v201
        %263 = vmatprep.subr.mxu0 0.0
        %264 = vmatpush2.msra.mxu0 0.0
        %265 = vmatprep.subr.mxu0 0.0
        %266 = vmatpush2.msra.mxu0 0.0
        %267 = vmatprep.subr.mxu0 0.0
        %268 = vmatpush2.msra.mxu0 0.0
        %269 = vmatprep.subr.mxu0 0.0
        %270 = vmatpush2.msra.mxu0 0.0
        %271 = vmatprep.subr.mxu0 0.0
        %272 = vmatpush2.msra.mxu0 0.0
        %273 = vmatprep.subr.mxu0 0.0
        %274 = vmatpush2.msra.mxu0 0.0
        %275 = vmatprep.subr.mxu0 0.0
        %276 = vmatpush2.msra.mxu0 0.0
        %277 = vmatprep.subr.mxu0 0.0
        %278 = vmatpush2.msra.mxu0 0.0
        %279 = vmatprep.subr.mxu0 0.0
        %280 = vmatpush2.msra.mxu0 0.0
        %281 = vmatprep.subr.mxu0 0.0
        %282 = vmatpush2.msra.mxu0 0.0
        %283 = vmatprep.subr.mxu0 0.0
        %284 = vmatpush2.msra.mxu0 0.0
        %285 = vmatprep.subr.mxu0 0.0
        %286 = vmatpush2.msra.mxu0 0.0
        %287 = vmatprep.subr.mxu0 0.0
        %288 = vmatpush2.msra.mxu0 0.0
        %289 = vmatprep.subr.mxu0 0.0
        %290 = vmatpush2.msra.mxu0 0.0
        %291 = vmatprep.subr.mxu0 0.0
        %292 = vmatpush2.msra.mxu0 0.0
        %293 = vmatprep.subr.mxu0 0.0
        %294 = vmatpush2.msra.mxu0 0.0
        %295 = vmatprep.mubr.f32.mxu0 0.0
        %296 = vmatmul.mubr.f32.gmra.mxu0 %v226
        %v297 = vpop.f32.mrf.mxu0
        %v298 = vadd.f32 0.0, %v297
        %v299 = vpop.f32.mrf.mxu0
        %300 = vmatprep.mubr.f32.mxu0 0.0
        %301 = vmatmul.mubr.f32.gmra.mxu0 %v229
        %v302 = vpop.f32.mrf.mxu0
        %v303 = vadd.f32 0.0, %v302
        %v304 = vpop.f32.mrf.mxu0
        %305 = vdwg.mxu0
        %v307 = vsel %vm224, %v298, 0
        %v310 = vsel %vm224, %v303, 0
        %312 = vmatprep.subr.mxu0 0.0
        %313 = vmatpush1.msra.mxu0 0.0
        %314 = vmatprep.subr.mxu0 0.0
        %315 = vmatpush1.msra.mxu0 0.0
        %316 = vmatprep.subr.mxu0 0.0
        %317 = vmatpush1.msra.mxu0 0.0
        %318 = vmatprep.subr.mxu0 0.0
        %319 = vmatpush1.msra.mxu0 0.0
        %320 = vmatprep.subr.mxu0 0.0
        %321 = vmatpush1.msra.mxu0 0.0
        %322 = vmatprep.subr.mxu0 0.0
        %323 = vmatpush1.msra.mxu0 0.0
        %324 = vmatprep.subr.mxu0 0.0
        %325 = vmatpush1.msra.mxu0 0.0
        %326 = vmatprep.subr.mxu0 0.0
        %327 = vmatpush1.msra.mxu0 0.0
        %328 = vmatprep.subr.mxu0 0.0
        %329 = vmatpush1.msra.mxu0 0.0
        %330 = vmatprep.subr.mxu0 0.0
        %331 = vmatpush1.msra.mxu0 0.0
        %332 = vmatprep.subr.mxu0 0.0
        %333 = vmatpush1.msra.mxu0 0.0
        %334 = vmatprep.subr.mxu0 0.0
        %335 = vmatpush1.msra.mxu0 0.0
        %336 = vmatprep.subr.mxu0 0.0
        %337 = vmatpush1.msra.mxu0 0.0
        %338 = vmatprep.subr.mxu0 0.0
        %339 = vmatpush1.msra.mxu0 0.0
        %340 = vmatprep.subr.mxu0 0.0
        %341 = vmatpush1.msra.mxu0 %v223
        %342 = vmatprep.subr.mxu0 0.0
        %343 = vmatpush1.msra.mxu0 %v222
        %344 = vmatprep.subr.mxu0 0.0
        %345 = vmatpush2.msra.mxu0 0.0
        %346 = vmatprep.subr.mxu0 0.0
        %347 = vmatpush2.msra.mxu0 0.0
        %348 = vmatprep.subr.mxu0 0.0
        %349 = vmatpush2.msra.mxu0 0.0
        %350 = vmatprep.subr.mxu0 0.0
        %351 = vmatpush2.msra.mxu0 0.0
        %352 = vmatprep.subr.mxu0 0.0
        %353 = vmatpush2.msra.mxu0 0.0
        %354 = vmatprep.subr.mxu0 0.0
        %355 = vmatpush2.msra.mxu0 0.0
        %356 = vmatprep.subr.mxu0 0.0
        %357 = vmatpush2.msra.mxu0 0.0
        %358 = vmatprep.subr.mxu0 0.0
        %359 = vmatpush2.msra.mxu0 0.0
        %360 = vmatprep.subr.mxu0 0.0
        %361 = vmatpush2.msra.mxu0 0.0
        %362 = vmatprep.subr.mxu0 0.0
        %363 = vmatpush2.msra.mxu0 0.0
        %364 = vmatprep.subr.mxu0 0.0
        %365 = vmatpush2.msra.mxu0 0.0
        %366 = vmatprep.subr.mxu0 0.0
        %367 = vmatpush2.msra.mxu0 0.0
        %368 = vmatprep.subr.mxu0 0.0
        %369 = vmatpush2.msra.mxu0 0.0
        %370 = vmatprep.subr.mxu0 0.0
        %371 = vmatpush2.msra.mxu0 0.0
        %372 = vmatprep.subr.mxu0 0.0
        %373 = vmatpush2.msra.mxu0 0.0
        %374 = vmatprep.subr.mxu0 0.0
        %375 = vmatpush2.msra.mxu0 0.0
        %376 = vmatprep.mubr.f32.mxu0 0.0
        %377 = vmatmul.mubr.f32.gmra.mxu0 %v307
        %v378 = vpop.f32.mrf.mxu0
        %v379 = vadd.f32 0.0, %v378
        %v380 = vpop.f32.mrf.mxu0
        %381 = vmatprep.mubr.f32.mxu0 0.0
        %382 = vmatmul.mubr.f32.gmra.mxu0 %v310
        %v383 = vpop.f32.mrf.mxu0
        %v384 = vadd.f32 0.0, %v383
        %v385 = vpop.f32.mrf.mxu0
        %386 = vdwg.mxu0
        %387 = vmatprep.subr.mxu0 0.0
        %388 = vmatpush1.msra.mxu0 0.0
        %389 = vmatprep.subr.mxu0 0.0
        %390 = vmatpush1.msra.mxu0 0.0
        %391 = vmatprep.subr.mxu0 0.0
        %392 = vmatpush1.msra.mxu0 0.0
        %393 = vmatprep.subr.mxu0 0.0
        %394 = vmatpush1.msra.mxu0 0.0
        %395 = vmatprep.subr.mxu0 0.0
        %396 = vmatpush1.msra.mxu0 0.0
        %397 = vmatprep.subr.mxu0 0.0
        %398 = vmatpush1.msra.mxu0 0.0
        %399 = vmatprep.subr.mxu0 0.0
        %400 = vmatpush1.msra.mxu0 0.0
        %401 = vmatprep.subr.mxu0 0.0
        %402 = vmatpush1.msra.mxu0 0.0
        %403 = vmatprep.subr.mxu0 0.0
        %404 = vmatpush1.msra.mxu0 0.0
        %405 = vmatprep.subr.mxu0 0.0
        %406 = vmatpush1.msra.mxu0 0.0
        %407 = vmatprep.subr.mxu0 0.0
        %408 = vmatpush1.msra.mxu0 0.0
        %409 = vmatprep.subr.mxu0 0.0
        %410 = vmatpush1.msra.mxu0 0.0
        %411 = vmatprep.subr.mxu0 0.0
        %412 = vmatpush1.msra.mxu0 0.0
        %413 = vmatprep.subr.mxu0 0.0
        %414 = vmatpush1.msra.mxu0 0.0
        %415 = vmatprep.subr.mxu0 0.0
        %416 = vmatpush1.msra.mxu0 %v204
        %417 = vmatprep.subr.mxu0 0.0
        %418 = vmatpush1.msra.mxu0 %v203
        %419 = vmatprep.subr.mxu0 0.0
        %420 = vmatpush2.msra.mxu0 0.0
        %421 = vmatprep.subr.mxu0 0.0
        %422 = vmatpush2.msra.mxu0 0.0
        %423 = vmatprep.subr.mxu0 0.0
        %424 = vmatpush2.msra.mxu0 0.0
        %425 = vmatprep.subr.mxu0 0.0
        %426 = vmatpush2.msra.mxu0 0.0
        %427 = vmatprep.subr.mxu0 0.0
        %428 = vmatpush2.msra.mxu0 0.0
        %429 = vmatprep.subr.mxu0 0.0
        %430 = vmatpush2.msra.mxu0 0.0
        %431 = vmatprep.subr.mxu0 0.0
        %432 = vmatpush2.msra.mxu0 0.0
        %433 = vmatprep.subr.mxu0 0.0
        %434 = vmatpush2.msra.mxu0 0.0
        %435 = vmatprep.subr.mxu0 0.0
        %436 = vmatpush2.msra.mxu0 0.0
        %437 = vmatprep.subr.mxu0 0.0
        %438 = vmatpush2.msra.mxu0 0.0
        %439 = vmatprep.subr.mxu0 0.0
        %440 = vmatpush2.msra.mxu0 0.0
        %441 = vmatprep.subr.mxu0 0.0
        %442 = vmatpush2.msra.mxu0 0.0
        %443 = vmatprep.subr.mxu0 0.0
        %444 = vmatpush2.msra.mxu0 0.0
        %445 = vmatprep.subr.mxu0 0.0
        %446 = vmatpush2.msra.mxu0 0.0
        %447 = vmatprep.subr.mxu0 0.0
        %448 = vmatpush2.msra.mxu0 0.0
        %449 = vmatprep.subr.mxu0 0.0
        %450 = vmatpush2.msra.mxu0 0.0
        %451 = vmatprep.mubr.f32.mxu0 0.0
        %452 = vmatmul.mubr.f32.gmra.mxu0 %v226
        %v453 = vpop.f32.mrf.mxu0
        %v454 = vadd.f32 0.0, %v453
        %v455 = vpop.f32.mrf.mxu0
        %456 = vmatprep.mubr.f32.mxu0 0.0
        %457 = vmatmul.mubr.f32.gmra.mxu0 %v229
        %v458 = vpop.f32.mrf.mxu0
        %v459 = vadd.f32 0.0, %v458
        %v460 = vpop.f32.mrf.mxu0
        %461 = vdwg.mxu0
        %v463 = vsel %vm224, %v454, 0
        %v466 = vsel %vm224, %v459, 0
        %468 = vmatprep.subr.mxu0 0.0
        %469 = vmatpush1.msra.mxu0 0.0
        %470 = vmatprep.subr.mxu0 0.0
        %471 = vmatpush1.msra.mxu0 0.0
        %472 = vmatprep.subr.mxu0 0.0
        %473 = vmatpush1.msra.mxu0 0.0
        %474 = vmatprep.subr.mxu0 0.0
        %475 = vmatpush1.msra.mxu0 0.0
        %476 = vmatprep.subr.mxu0 0.0
        %477 = vmatpush1.msra.mxu0 0.0
        %478 = vmatprep.subr.mxu0 0.0
        %479 = vmatpush1.msra.mxu0 0.0
        %480 = vmatprep.subr.mxu0 0.0
        %481 = vmatpush1.msra.mxu0 0.0
        %482 = vmatprep.subr.mxu0 0.0
        %483 = vmatpush1.msra.mxu0 0.0
        %484 = vmatprep.subr.mxu0 0.0
        %485 = vmatpush1.msra.mxu0 0.0
        %486 = vmatprep.subr.mxu0 0.0
        %487 = vmatpush1.msra.mxu0 0.0
        %488 = vmatprep.subr.mxu0 0.0
        %489 = vmatpush1.msra.mxu0 0.0
        %490 = vmatprep.subr.mxu0 0.0
        %491 = vmatpush1.msra.mxu0 0.0
        %492 = vmatprep.subr.mxu0 0.0
        %493 = vmatpush1.msra.mxu0 0.0
        %494 = vmatprep.subr.mxu0 0.0
        %495 = vmatpush1.msra.mxu0 0.0
        %496 = vmatprep.subr.mxu0 0.0
        %497 = vmatpush1.msra.mxu0 %v223
        %498 = vmatprep.subr.mxu0 0.0
        %499 = vmatpush1.msra.mxu0 %v222
        %500 = vmatprep.subr.mxu0 0.0
        %501 = vmatpush2.msra.mxu0 0.0
        %502 = vmatprep.subr.mxu0 0.0
        %503 = vmatpush2.msra.mxu0 0.0
        %504 = vmatprep.subr.mxu0 0.0
        %505 = vmatpush2.msra.mxu0 0.0
        %506 = vmatprep.subr.mxu0 0.0
        %507 = vmatpush2.msra.mxu0 0.0
        %508 = vmatprep.subr.mxu0 0.0
        %509 = vmatpush2.msra.mxu0 0.0
        %510 = vmatprep.subr.mxu0 0.0
        %511 = vmatpush2.msra.mxu0 0.0
        %512 = vmatprep.subr.mxu0 0.0
        %513 = vmatpush2.msra.mxu0 0.0
        %514 = vmatprep.subr.mxu0 0.0
        %515 = vmatpush2.msra.mxu0 0.0
        %516 = vmatprep.subr.mxu0 0.0
        %517 = vmatpush2.msra.mxu0 0.0
        %518 = vmatprep.subr.mxu0 0.0
        %519 = vmatpush2.msra.mxu0 0.0
        %520 = vmatprep.subr.mxu0 0.0
        %521 = vmatpush2.msra.mxu0 0.0
        %522 = vmatprep.subr.mxu0 0.0
        %523 = vmatpush2.msra.mxu0 0.0
        %524 = vmatprep.subr.mxu0 0.0
        %525 = vmatpush2.msra.mxu0 0.0
        %526 = vmatprep.subr.mxu0 0.0
        %527 = vmatpush2.msra.mxu0 0.0
        %528 = vmatprep.subr.mxu0 0.0
        %529 = vmatpush2.msra.mxu0 0.0
        %530 = vmatprep.subr.mxu0 0.0
        %531 = vmatpush2.msra.mxu0 0.0
        %532 = vmatprep.mubr.f32.mxu0 0.0
        %533 = vmatmul.mubr.f32.gmra.mxu0 %v463
        %v534 = vpop.f32.mrf.mxu0
        %v535 = vadd.f32 0.0, %v534
        %v536 = vpop.f32.mrf.mxu0
        %537 = vmatprep.mubr.f32.mxu0 0.0
        %538 = vmatmul.mubr.f32.gmra.mxu0 %v466
        %v539 = vpop.f32.mrf.mxu0
        %v540 = vadd.f32 0.0, %v539
        %v541 = vpop.f32.mrf.mxu0
        %542 = vdwg.mxu0
        %v543 = vmul.f32 %v201, %v201
        %v544 = vmul.f32 %v202, %v202
        %545 = vmatprep.subr.mxu0 0.0
        %546 = vmatpush1.msra.mxu0 0.0
        %547 = vmatprep.subr.mxu0 0.0
        %548 = vmatpush1.msra.mxu0 0.0
        %549 = vmatprep.subr.mxu0 0.0
        %550 = vmatpush1.msra.mxu0 0.0
        %551 = vmatprep.subr.mxu0 0.0
        %552 = vmatpush1.msra.mxu0 0.0
        %553 = vmatprep.subr.mxu0 0.0
        %554 = vmatpush1.msra.mxu0 0.0
        %555 = vmatprep.subr.mxu0 0.0
        %556 = vmatpush1.msra.mxu0 0.0
        %557 = vmatprep.subr.mxu0 0.0
        %558 = vmatpush1.msra.mxu0 0.0
        %559 = vmatprep.subr.mxu0 0.0
        %560 = vmatpush1.msra.mxu0 0.0
        %561 = vmatprep.subr.mxu0 0.0
        %562 = vmatpush1.msra.mxu0 0.0
        %563 = vmatprep.subr.mxu0 0.0
        %564 = vmatpush1.msra.mxu0 0.0
        %565 = vmatprep.subr.mxu0 0.0
        %566 = vmatpush1.msra.mxu0 0.0
        %567 = vmatprep.subr.mxu0 0.0
        %568 = vmatpush1.msra.mxu0 0.0
        %569 = vmatprep.subr.mxu0 0.0
        %570 = vmatpush1.msra.mxu0 0.0
        %571 = vmatprep.subr.mxu0 0.0
        %572 = vmatpush1.msra.mxu0 0.0
        %573 = vmatprep.subr.mxu0 0.0
        %574 = vmatpush1.msra.mxu0 %v544
        %575 = vmatprep.subr.mxu0 0.0
        %576 = vmatpush1.msra.mxu0 %v543
        %577 = vmatprep.subr.mxu0 0.0
        %578 = vmatpush2.msra.mxu0 0.0
        %579 = vmatprep.subr.mxu0 0.0
        %580 = vmatpush2.msra.mxu0 0.0
        %581 = vmatprep.subr.mxu0 0.0
        %582 = vmatpush2.msra.mxu0 0.0
        %583 = vmatprep.subr.mxu0 0.0
        %584 = vmatpush2.msra.mxu0 0.0
        %585 = vmatprep.subr.mxu0 0.0
        %586 = vmatpush2.msra.mxu0 0.0
        %587 = vmatprep.subr.mxu0 0.0
        %588 = vmatpush2.msra.mxu0 0.0
        %589 = vmatprep.subr.mxu0 0.0
        %590 = vmatpush2.msra.mxu0 0.0
        %591 = vmatprep.subr.mxu0 0.0
        %592 = vmatpush2.msra.mxu0 0.0
        %593 = vmatprep.subr.mxu0 0.0
        %594 = vmatpush2.msra.mxu0 0.0
        %595 = vmatprep.subr.mxu0 0.0
        %596 = vmatpush2.msra.mxu0 0.0
        %597 = vmatprep.subr.mxu0 0.0
        %598 = vmatpush2.msra.mxu0 0.0
        %599 = vmatprep.subr.mxu0 0.0
        %600 = vmatpush2.msra.mxu0 0.0
        %601 = vmatprep.subr.mxu0 0.0
        %602 = vmatpush2.msra.mxu0 0.0
        %603 = vmatprep.subr.mxu0 0.0
        %604 = vmatpush2.msra.mxu0 0.0
        %605 = vmatprep.subr.mxu0 0.0
        %606 = vmatpush2.msra.mxu0 0.0
        %607 = vmatprep.subr.mxu0 0.0
        %608 = vmatpush2.msra.mxu0 0.0
        %609 = vmatprep.mubr.f32.mxu0 0.0
        %610 = vmatmul.mubr.f32.gmra.mxu0 %v226
        %v611 = vpop.f32.mrf.mxu0
        %v612 = vadd.f32 0.0, %v611
        %v613 = vpop.f32.mrf.mxu0
        %614 = vmatprep.mubr.f32.mxu0 0.0
        %615 = vmatmul.mubr.f32.gmra.mxu0 %v229
        %v616 = vpop.f32.mrf.mxu0
        %v617 = vadd.f32 0.0, %v616
        %v618 = vpop.f32.mrf.mxu0
        %619 = vdwg.mxu0
        %v621 = vsel %vm224, %v612, 0
        %v624 = vsel %vm224, %v617, 0
        %626 = vmatprep.subr.mxu0 0.0
        %627 = vmatpush1.msra.mxu0 0.0
        %628 = vmatprep.subr.mxu0 0.0
        %629 = vmatpush1.msra.mxu0 0.0
        %630 = vmatprep.subr.mxu0 0.0
        %631 = vmatpush1.msra.mxu0 0.0
        %632 = vmatprep.subr.mxu0 0.0
        %633 = vmatpush1.msra.mxu0 0.0
        %634 = vmatprep.subr.mxu0 0.0
        %635 = vmatpush1.msra.mxu0 0.0
        %636 = vmatprep.subr.mxu0 0.0
        %637 = vmatpush1.msra.mxu0 0.0
        %638 = vmatprep.subr.mxu0 0.0
        %639 = vmatpush1.msra.mxu0 0.0
        %640 = vmatprep.subr.mxu0 0.0
        %641 = vmatpush1.msra.mxu0 0.0
        %642 = vmatprep.subr.mxu0 0.0
        %643 = vmatpush1.msra.mxu0 0.0
        %644 = vmatprep.subr.mxu0 0.0
        %645 = vmatpush1.msra.mxu0 0.0
        %646 = vmatprep.subr.mxu0 0.0
        %647 = vmatpush1.msra.mxu0 0.0
        %648 = vmatprep.subr.mxu0 0.0
        %649 = vmatpush1.msra.mxu0 0.0
        %650 = vmatprep.subr.mxu0 0.0
        %651 = vmatpush1.msra.mxu0 0.0
        %652 = vmatprep.subr.mxu0 0.0
        %653 = vmatpush1.msra.mxu0 0.0
        %654 = vmatprep.subr.mxu0 0.0
        %655 = vmatpush1.msra.mxu0 %v223
        %656 = vmatprep.subr.mxu0 0.0
        %657 = vmatpush1.msra.mxu0 %v222
        %658 = vmatprep.subr.mxu0 0.0
        %659 = vmatpush2.msra.mxu0 0.0
        %660 = vmatprep.subr.mxu0 0.0
        %661 = vmatpush2.msra.mxu0 0.0
        %662 = vmatprep.subr.mxu0 0.0
        %663 = vmatpush2.msra.mxu0 0.0
        %664 = vmatprep.subr.mxu0 0.0
        %665 = vmatpush2.msra.mxu0 0.0
        %666 = vmatprep.subr.mxu0 0.0
        %667 = vmatpush2.msra.mxu0 0.0
        %668 = vmatprep.subr.mxu0 0.0
        %669 = vmatpush2.msra.mxu0 0.0
        %670 = vmatprep.subr.mxu0 0.0
        %671 = vmatpush2.msra.mxu0 0.0
        %672 = vmatprep.subr.mxu0 0.0
        %673 = vmatpush2.msra.mxu0 0.0
        %674 = vmatprep.subr.mxu0 0.0
        %675 = vmatpush2.msra.mxu0 0.0
        %676 = vmatprep.subr.mxu0 0.0
        %677 = vmatpush2.msra.mxu0 0.0
        %678 = vmatprep.subr.mxu0 0.0
        %679 = vmatpush2.msra.mxu0 0.0
        %680 = vmatprep.subr.mxu0 0.0
        %681 = vmatpush2.msra.mxu0 0.0
        %682 = vmatprep.subr.mxu0 0.0
        %683 = vmatpush2.msra.mxu0 0.0
        %684 = vmatprep.subr.mxu0 0.0
        %685 = vmatpush2.msra.mxu0 0.0
        %686 = vmatprep.subr.mxu0 0.0
        %687 = vmatpush2.msra.mxu0 0.0
        %688 = vmatprep.subr.mxu0 0.0
        %689 = vmatpush2.msra.mxu0 0.0
        %690 = vmatprep.mubr.f32.mxu0 0.0
        %691 = vmatmul.mubr.f32.gmra.mxu0 %v621
        %v692 = vpop.f32.mrf.mxu0
        %v693 = vadd.f32 0.0, %v692
        %v694 = vpop.f32.mrf.mxu0
        %695 = vmatprep.mubr.f32.mxu0 0.0
        %696 = vmatmul.mubr.f32.gmra.mxu0 %v624
        %v697 = vpop.f32.mrf.mxu0
        %v698 = vadd.f32 0.0, %v697
        %v699 = vpop.f32.mrf.mxu0
        %700 = vdwg.mxu0
        %v701 = vmul.f32 %v203, %v203
        %v702 = vmul.f32 %v204, %v204
        %703 = vmatprep.subr.mxu0 0.0
        %704 = vmatpush1.msra.mxu0 0.0
        %705 = vmatprep.subr.mxu0 0.0
        %706 = vmatpush1.msra.mxu0 0.0
        %707 = vmatprep.subr.mxu0 0.0
        %708 = vmatpush1.msra.mxu0 0.0
        %709 = vmatprep.subr.mxu0 0.0
        %710 = vmatpush1.msra.mxu0 0.0
        %711 = vmatprep.subr.mxu0 0.0
        %712 = vmatpush1.msra.mxu0 0.0
        %713 = vmatprep.subr.mxu0 0.0
        %714 = vmatpush1.msra.mxu0 0.0
        %715 = vmatprep.subr.mxu0 0.0
        %716 = vmatpush1.msra.mxu0 0.0
        %717 = vmatprep.subr.mxu0 0.0
        %718 = vmatpush1.msra.mxu0 0.0
        %719 = vmatprep.subr.mxu0 0.0
        %720 = vmatpush1.msra.mxu0 0.0
        %721 = vmatprep.subr.mxu0 0.0
        %722 = vmatpush1.msra.mxu0 0.0
        %723 = vmatprep.subr.mxu0 0.0
        %724 = vmatpush1.msra.mxu0 0.0
        %725 = vmatprep.subr.mxu0 0.0
        %726 = vmatpush1.msra.mxu0 0.0
        %727 = vmatprep.subr.mxu0 0.0
        %728 = vmatpush1.msra.mxu0 0.0
        %729 = vmatprep.subr.mxu0 0.0
        %730 = vmatpush1.msra.mxu0 0.0
        %731 = vmatprep.subr.mxu0 0.0
        %732 = vmatpush1.msra.mxu0 %v702
        %733 = vmatprep.subr.mxu0 0.0
        %734 = vmatpush1.msra.mxu0 %v701
        %735 = vmatprep.subr.mxu0 0.0
        %736 = vmatpush2.msra.mxu0 0.0
        %737 = vmatprep.subr.mxu0 0.0
        %738 = vmatpush2.msra.mxu0 0.0
        %739 = vmatprep.subr.mxu0 0.0
        %740 = vmatpush2.msra.mxu0 0.0
        %741 = vmatprep.subr.mxu0 0.0
        %742 = vmatpush2.msra.mxu0 0.0
        %743 = vmatprep.subr.mxu0 0.0
        %744 = vmatpush2.msra.mxu0 0.0
        %745 = vmatprep.subr.mxu0 0.0
        %746 = vmatpush2.msra.mxu0 0.0
        %747 = vmatprep.subr.mxu0 0.0
        %748 = vmatpush2.msra.mxu0 0.0
        %749 = vmatprep.subr.mxu0 0.0
        %750 = vmatpush2.msra.mxu0 0.0
        %751 = vmatprep.subr.mxu0 0.0
        %752 = vmatpush2.msra.mxu0 0.0
        %753 = vmatprep.subr.mxu0 0.0
        %754 = vmatpush2.msra.mxu0 0.0
        %755 = vmatprep.subr.mxu0 0.0
        %756 = vmatpush2.msra.mxu0 0.0
        %757 = vmatprep.subr.mxu0 0.0
        %758 = vmatpush2.msra.mxu0 0.0
        %759 = vmatprep.subr.mxu0 0.0
        %760 = vmatpush2.msra.mxu0 0.0
        %761 = vmatprep.subr.mxu0 0.0
        %762 = vmatpush2.msra.mxu0 0.0
        %763 = vmatprep.subr.mxu0 0.0
        %764 = vmatpush2.msra.mxu0 0.0
        %765 = vmatprep.subr.mxu0 0.0
        %766 = vmatpush2.msra.mxu0 0.0
        %767 = vmatprep.mubr.f32.mxu0 0.0
        %768 = vmatmul.mubr.f32.gmra.mxu0 %v226
        %v769 = vpop.f32.mrf.mxu0
        %v770 = vadd.f32 0.0, %v769
        %v771 = vpop.f32.mrf.mxu0
        %772 = vmatprep.mubr.f32.mxu0 0.0
        %773 = vmatmul.mubr.f32.gmra.mxu0 %v229
        %v774 = vpop.f32.mrf.mxu0
        %v775 = vadd.f32 0.0, %v774
        %v776 = vpop.f32.mrf.mxu0
        %777 = vdwg.mxu0
        %v779 = vsel %vm224, %v770, 0
        %v782 = vsel %vm224, %v775, 0
        %784 = vmatprep.subr.mxu0 0.0
        %785 = vmatpush1.msra.mxu0 0.0
        %786 = vmatprep.subr.mxu0 0.0
        %787 = vmatpush1.msra.mxu0 0.0
        %788 = vmatprep.subr.mxu0 0.0
        %789 = vmatpush1.msra.mxu0 0.0
        %790 = vmatprep.subr.mxu0 0.0
        %791 = vmatpush1.msra.mxu0 0.0
        %792 = vmatprep.subr.mxu0 0.0
        %793 = vmatpush1.msra.mxu0 0.0
        %794 = vmatprep.subr.mxu0 0.0
        %795 = vmatpush1.msra.mxu0 0.0
        %796 = vmatprep.subr.mxu0 0.0
        %797 = vmatpush1.msra.mxu0 0.0
        %798 = vmatprep.subr.mxu0 0.0
        %799 = vmatpush1.msra.mxu0 0.0
        %800 = vmatprep.subr.mxu0 0.0
        %801 = vmatpush1.msra.mxu0 0.0
        %802 = vmatprep.subr.mxu0 0.0
        %803 = vmatpush1.msra.mxu0 0.0
        %804 = vmatprep.subr.mxu0 0.0
        %805 = vmatpush1.msra.mxu0 0.0
        %806 = vmatprep.subr.mxu0 0.0
        %807 = vmatpush1.msra.mxu0 0.0
        %808 = vmatprep.subr.mxu0 0.0
        %809 = vmatpush1.msra.mxu0 0.0
        %810 = vmatprep.subr.mxu0 0.0
        %811 = vmatpush1.msra.mxu0 0.0
        %812 = vmatprep.subr.mxu0 0.0
        %813 = vmatpush1.msra.mxu0 %v223
        %814 = vmatprep.subr.mxu0 0.0
        %815 = vmatpush1.msra.mxu0 %v222
        %816 = vmatprep.subr.mxu0 0.0
        %817 = vmatpush2.msra.mxu0 0.0
        %818 = vmatprep.subr.mxu0 0.0
        %819 = vmatpush2.msra.mxu0 0.0
        %820 = vmatprep.subr.mxu0 0.0
        %821 = vmatpush2.msra.mxu0 0.0
        %822 = vmatprep.subr.mxu0 0.0
        %823 = vmatpush2.msra.mxu0 0.0
        %824 = vmatprep.subr.mxu0 0.0
        %825 = vmatpush2.msra.mxu0 0.0
        %826 = vmatprep.subr.mxu0 0.0
        %827 = vmatpush2.msra.mxu0 0.0
        %828 = vmatprep.subr.mxu0 0.0
        %829 = vmatpush2.msra.mxu0 0.0
        %830 = vmatprep.subr.mxu0 0.0
        %831 = vmatpush2.msra.mxu0 0.0
        %832 = vmatprep.subr.mxu0 0.0
        %833 = vmatpush2.msra.mxu0 0.0
        %834 = vmatprep.subr.mxu0 0.0
        %835 = vmatpush2.msra.mxu0 0.0
        %836 = vmatprep.subr.mxu0 0.0
        %837 = vmatpush2.msra.mxu0 0.0
        %838 = vmatprep.subr.mxu0 0.0
        %839 = vmatpush2.msra.mxu0 0.0
        %840 = vmatprep.subr.mxu0 0.0
        %841 = vmatpush2.msra.mxu0 0.0
        %842 = vmatprep.subr.mxu0 0.0
        %843 = vmatpush2.msra.mxu0 0.0
        %844 = vmatprep.subr.mxu0 0.0
        %845 = vmatpush2.msra.mxu0 0.0
        %846 = vmatprep.subr.mxu0 0.0
        %847 = vmatpush2.msra.mxu0 0.0
        %848 = vmatprep.mubr.f32.mxu0 0.0
        %849 = vmatmul.mubr.f32.gmra.mxu0 %v779
        %v850 = vpop.f32.mrf.mxu0
        %v851 = vadd.f32 0.0, %v850
        %v852 = vpop.f32.mrf.mxu0
        %853 = vmatprep.mubr.f32.mxu0 0.0
        %854 = vmatmul.mubr.f32.gmra.mxu0 %v782
        %v855 = vpop.f32.mrf.mxu0
        %v856 = vadd.f32 0.0, %v855
        %v857 = vpop.f32.mrf.mxu0
        %858 = vdwg.mxu0
        %v859 = vmul.f32 %v201, %v203
        %v860 = vmul.f32 %v202, %v204
        %861 = vmatprep.subr.mxu0 0.0
        %862 = vmatpush1.msra.mxu0 0.0
        %863 = vmatprep.subr.mxu0 0.0
        %864 = vmatpush1.msra.mxu0 0.0
        %865 = vmatprep.subr.mxu0 0.0
        %866 = vmatpush1.msra.mxu0 0.0
        %867 = vmatprep.subr.mxu0 0.0
        %868 = vmatpush1.msra.mxu0 0.0
        %869 = vmatprep.subr.mxu0 0.0
        %870 = vmatpush1.msra.mxu0 0.0
        %871 = vmatprep.subr.mxu0 0.0
        %872 = vmatpush1.msra.mxu0 0.0
        %873 = vmatprep.subr.mxu0 0.0
        %874 = vmatpush1.msra.mxu0 0.0
        %875 = vmatprep.subr.mxu0 0.0
        %876 = vmatpush1.msra.mxu0 0.0
        %877 = vmatprep.subr.mxu0 0.0
        %878 = vmatpush1.msra.mxu0 0.0
        %879 = vmatprep.subr.mxu0 0.0
        %880 = vmatpush1.msra.mxu0 0.0
        %881 = vmatprep.subr.mxu0 0.0
        %882 = vmatpush1.msra.mxu0 0.0
        %883 = vmatprep.subr.mxu0 0.0
        %884 = vmatpush1.msra.mxu0 0.0
        %885 = vmatprep.subr.mxu0 0.0
        %886 = vmatpush1.msra.mxu0 0.0
        %887 = vmatprep.subr.mxu0 0.0
        %888 = vmatpush1.msra.mxu0 0.0
        %889 = vmatprep.subr.mxu0 0.0
        %890 = vmatpush1.msra.mxu0 %v860
        %891 = vmatprep.subr.mxu0 0.0
        %892 = vmatpush1.msra.mxu0 %v859
        %893 = vmatprep.subr.mxu0 0.0
        %894 = vmatpush2.msra.mxu0 0.0
        %895 = vmatprep.subr.mxu0 0.0
        %896 = vmatpush2.msra.mxu0 0.0
        %897 = vmatprep.subr.mxu0 0.0
        %898 = vmatpush2.msra.mxu0 0.0
        %899 = vmatprep.subr.mxu0 0.0
        %900 = vmatpush2.msra.mxu0 0.0
        %901 = vmatprep.subr.mxu0 0.0
        %902 = vmatpush2.msra.mxu0 0.0
        %903 = vmatprep.subr.mxu0 0.0
        %904 = vmatpush2.msra.mxu0 0.0
        %905 = vmatprep.subr.mxu0 0.0
        %906 = vmatpush2.msra.mxu0 0.0
        %907 = vmatprep.subr.mxu0 0.0
        %908 = vmatpush2.msra.mxu0 0.0
        %909 = vmatprep.subr.mxu0 0.0
        %910 = vmatpush2.msra.mxu0 0.0
        %911 = vmatprep.subr.mxu0 0.0
        %912 = vmatpush2.msra.mxu0 0.0
        %913 = vmatprep.subr.mxu0 0.0
        %914 = vmatpush2.msra.mxu0 0.0
        %915 = vmatprep.subr.mxu0 0.0
        %916 = vmatpush2.msra.mxu0 0.0
        %917 = vmatprep.subr.mxu0 0.0
        %918 = vmatpush2.msra.mxu0 0.0
        %919 = vmatprep.subr.mxu0 0.0
        %920 = vmatpush2.msra.mxu0 0.0
        %921 = vmatprep.subr.mxu0 0.0
        %922 = vmatpush2.msra.mxu0 0.0
        %923 = vmatprep.subr.mxu0 0.0
        %924 = vmatpush2.msra.mxu0 0.0
        %925 = vmatprep.mubr.f32.mxu0 0.0
        %926 = vmatmul.mubr.f32.gmra.mxu0 %v226
        %v927 = vpop.f32.mrf.mxu0
        %v928 = vadd.f32 0.0, %v927
        %v929 = vpop.f32.mrf.mxu0
        %930 = vmatprep.mubr.f32.mxu0 0.0
        %931 = vmatmul.mubr.f32.gmra.mxu0 %v229
        %v932 = vpop.f32.mrf.mxu0
        %v933 = vadd.f32 0.0, %v932
        %v934 = vpop.f32.mrf.mxu0
        %935 = vdwg.mxu0
        %v937 = vsel %vm224, %v928, 0
        %v940 = vsel %vm224, %v933, 0
        %942 = vmatprep.subr.mxu0 0.0
        %943 = vmatpush1.msra.mxu0 0.0
        %944 = vmatprep.subr.mxu0 0.0
        %945 = vmatpush1.msra.mxu0 0.0
        %946 = vmatprep.subr.mxu0 0.0
        %947 = vmatpush1.msra.mxu0 0.0
        %948 = vmatprep.subr.mxu0 0.0
        %949 = vmatpush1.msra.mxu0 0.0
        %950 = vmatprep.subr.mxu0 0.0
        %951 = vmatpush1.msra.mxu0 0.0
        %952 = vmatprep.subr.mxu0 0.0
        %953 = vmatpush1.msra.mxu0 0.0
        %954 = vmatprep.subr.mxu0 0.0
        %955 = vmatpush1.msra.mxu0 0.0
        %956 = vmatprep.subr.mxu0 0.0
        %957 = vmatpush1.msra.mxu0 0.0
        %958 = vmatprep.subr.mxu0 0.0
        %959 = vmatpush1.msra.mxu0 0.0
        %960 = vmatprep.subr.mxu0 0.0
        %961 = vmatpush1.msra.mxu0 0.0
        %962 = vmatprep.subr.mxu0 0.0
        %963 = vmatpush1.msra.mxu0 0.0
        %964 = vmatprep.subr.mxu0 0.0
        %965 = vmatpush1.msra.mxu0 0.0
        %966 = vmatprep.subr.mxu0 0.0
        %967 = vmatpush1.msra.mxu0 0.0
        %968 = vmatprep.subr.mxu0 0.0
        %969 = vmatpush1.msra.mxu0 0.0
        %970 = vmatprep.subr.mxu0 0.0
        %971 = vmatpush1.msra.mxu0 %v223
        %972 = vmatprep.subr.mxu0 0.0
        %973 = vmatpush1.msra.mxu0 %v222
        %974 = vmatprep.subr.mxu0 0.0
        %975 = vmatpush2.msra.mxu0 0.0
        %976 = vmatprep.subr.mxu0 0.0
        %977 = vmatpush2.msra.mxu0 0.0
        %978 = vmatprep.subr.mxu0 0.0
        %979 = vmatpush2.msra.mxu0 0.0
        %980 = vmatprep.subr.mxu0 0.0
        %981 = vmatpush2.msra.mxu0 0.0
        %982 = vmatprep.subr.mxu0 0.0
        %983 = vmatpush2.msra.mxu0 0.0
        %984 = vmatprep.subr.mxu0 0.0
        %985 = vmatpush2.msra.mxu0 0.0
        %986 = vmatprep.subr.mxu0 0.0
        %987 = vmatpush2.msra.mxu0 0.0
        %988 = vmatprep.subr.mxu0 0.0
        %989 = vmatpush2.msra.mxu0 0.0
        %990 = vmatprep.subr.mxu0 0.0
        %991 = vmatpush2.msra.mxu0 0.0
        %992 = vmatprep.subr.mxu0 0.0
        %993 = vmatpush2.msra.mxu0 0.0
        %994 = vmatprep.subr.mxu0 0.0
        %995 = vmatpush2.msra.mxu0 0.0
        %996 = vmatprep.subr.mxu0 0.0
        %997 = vmatpush2.msra.mxu0 0.0
        %998 = vmatprep.subr.mxu0 0.0
        %999 = vmatpush2.msra.mxu0 0.0
        %1000 = vmatprep.subr.mxu0 0.0
        %1001 = vmatpush2.msra.mxu0 0.0
        %1002 = vmatprep.subr.mxu0 0.0
        %1003 = vmatpush2.msra.mxu0 0.0
        %1004 = vmatprep.subr.mxu0 0.0
        %1005 = vmatpush2.msra.mxu0 0.0
        %1006 = vmatprep.mubr.f32.mxu0 0.0
        %1007 = vmatmul.mubr.f32.gmra.mxu0 %v937
        %v1008 = vpop.f32.mrf.mxu0
        %v1009 = vadd.f32 0.0, %v1008
        %v1010 = vpop.f32.mrf.mxu0
        %1011 = vmatprep.mubr.f32.mxu0 0.0
        %1012 = vmatmul.mubr.f32.gmra.mxu0 %v940
        %v1013 = vpop.f32.mrf.mxu0
        %v1014 = vadd.f32 0.0, %v1013
        %v1015 = vpop.f32.mrf.mxu0
        %1016 = vdwg.mxu0
        %v1017 = vmul.f32 %v379, 0.012345679
        %v1018 = vmul.f32 %v384, 0.012345679
        %v1019 = vmul.f32 %v535, 0.012345679
        %v1020 = vmul.f32 %v540, 0.012345679
        %v1021 = vmul.f32 %v1019, %v379
        %v1022 = vmul.f32 %v1020, %v384
        %v1023 = vsub.f32 %v1009, %v1021
        %v1024 = vsub.f32 %v1014, %v1022
        %v1025 = vmul.f32 %v1017, %v535
        %v1026 = vmul.f32 %v1018, %v540
        %v1027 = vsub.f32 %v1023, %v1025
        %v1028 = vsub.f32 %v1024, %v1026
        %v1029 = vmul.f32 %v1017, %v1019
        %v1030 = vmul.f32 %v1018, %v1020
        %v1031 = vmul.f32 %v1029, 81.0
        %v1032 = vmul.f32 %v1030, 81.0
        %v1033 = vadd.f32 %v1027, %v1031
        %v1034 = vadd.f32 %v1028, %v1032
        %v1035 = vmul.f32 %v1017, 2.0
        %v1036 = vmul.f32 %v1018, 2.0
        %v1037 = vmul.f32 %v1035, %v379
        %v1038 = vmul.f32 %v1036, %v384
        %v1039 = vsub.f32 %v693, %v1037
        %v1040 = vsub.f32 %v698, %v1038
        %v1041 = vmul.f32 %v1017, %v1017
        %v1042 = vmul.f32 %v1018, %v1018
        %v1043 = vmul.f32 %v1041, 81.0
        %v1044 = vmul.f32 %v1042, 81.0
        %v1045 = vadd.f32 %v1039, %v1043
        %v1046 = vadd.f32 %v1040, %v1044
        %v1047 = vmul.f32 %v1019, 2.0
        %v1048 = vmul.f32 %v1020, 2.0
        %v1049 = vmul.f32 %v1047, %v535
        %v1050 = vmul.f32 %v1048, %v540
        %v1051 = vsub.f32 %v851, %v1049
        %v1052 = vsub.f32 %v856, %v1050
        %v1053 = vmul.f32 %v1019, %v1019
        %v1054 = vmul.f32 %v1020, %v1020
        %v1055 = vmul.f32 %v1053, 81.0
        %v1056 = vmul.f32 %v1054, 81.0
        %v1057 = vadd.f32 %v1051, %v1055
        %v1058 = vadd.f32 %v1052, %v1056
        %v1059 = vmul.f32 %v1033, %v1033
        %v1060 = vmul.f32 %v1034, %v1034
        %v1061 = vmul.f32 %v1045, %v1057
        %v1062 = vmul.f32 %v1046, %v1058
        %v1063 = vadd.f32 %v1061, 1e-05
        %v1064 = vadd.f32 %v1062, 1e-05
        %v1065 = vrcp.pop %v1063
        %v1066 = vmul.f32 %v1059, %v1065
        %v1067 = vrcp.pop %v1064
        %v1068 = vmul.f32 %v1060, %v1067
        %v1069 = vsel %vm224, %v1066, 0.0
        %v1070 = vsel %vm224, %v1068, 0.0
        %v1071 = vadd.f32 %v1069, %v1070
        %v1072 = vrot.slane %v1071, 4
        %v1073 = vadd.f32 %v1071, %v1072
        %v1074 = vrot.slane %v1073, 2
        %v1075 = vadd.f32 %v1073, %v1074
        %v1076 = vrot.slane %v1075, 1
        %v1077 = vadd.f32 %v1075, %v1076
        %v1078 = vsel %vm224, %v1077, 0.0
        %1079 = vst [vmem:[%s200] sm:$0x1] %v1078
        %s1080 = sand.u32 %s82, 1
        %s1081 = scalar_lea.sflag [#allocation4], %s1080
        %s1082 = sand.u32 %s82, 1
        %s1083 = scalar_lea.vmem [#allocation7], %s1082
        // Predicated region
        $region37: #{tpu_custom_call.1} parent=27 // pred_check
          %p1084 = pneg %p92
        $region38: #{tpu_custom_call.1} parent=27 // pred_check_branch
          %1086 = sbr.rel (%p1084) target = $region40
        $region39: #{tpu_custom_call.1} parent=27 // pred_region
          %s1088 = ssub.s32 16, 16
          %1089 = vsyncadd %s1081, %s1088
          %s1090 = smul.addr %s22, 16
          %s1091 = scalar_lea.hbm %s2, %s1090
          %s1093 = sshll.u32 %s1083, 4
          %s1094 = int_to_ptr.vmem [resolvable:$true] %s1093
          %1096 = dma.vmem_to_hbm [thread:$0]  %s1094, 16, %s1091, %s1081
        $region40: #{tpu_custom_call.1} parent=27 // pred_fallthru
          _
      $region28: #{tpu_custom_call.1} parent=5 // pred_fallthru
        _
      %p1097 = scmp.le.s32.totalorder 2, %s17
      // Predicated region
      $region41: #{tpu_custom_call.1} parent=5 // pred_check
        %p1098 = pneg %p1097
      $region42: #{tpu_custom_call.1} parent=5 // pred_check_branch
        %1100 = sbr.rel (%p1098) target = $region44
      $region43: #{tpu_custom_call.1} parent=5 // pred_region
        %s1101 = ssub.s32 %s17, 2
        // Predicated region
        $region45: #{tpu_custom_call.1} parent=43 // pred_check
          %p1102 = pneg %p98
        $region46: #{tpu_custom_call.1} parent=43 // pred_check_branch
          %1104 = sbr.rel (%p1102) target = $region48
        $region47: #{tpu_custom_call.1} parent=43 // pred_region
          %s1105 = sand.u32 %s83, 1
          %s1106 = scalar_lea.sflag [#allocation4], %s1105
          %s1107 = sand.u32 %s83, 1
          %s1108 = scalar_lea.vmem [#allocation7], %s1107
          %1109 = dma.done %s1106, 16
        $region48: #{tpu_custom_call.1} parent=43 // pred_fallthru
          _
      $region44: #{tpu_custom_call.1} parent=5 // pred_fallthru
        _
    $region6: #{tpu_custom_call.1} parent=1 // loop_footer
      %s21 = sadd.s32 1, %s17
    $region7: #{tpu_custom_call.1} parent=1 // loop_footer_branch
      %16 = sbr.rel target = $region3
    $region8: #{tpu_custom_call.1} parent=1 // loop_exit
      _
    %1110 = vsyncpa [#allocation3], 1
    %s1111 = scalar_lea.sflag [#allocation3], 1
    %1112 = vsyncpa %s1111, 1
    %1113 = vsyncpa [#allocation6], 1
    %s1114 = scalar_lea.sflag [#allocation6], 1
    %1115 = vsyncpa %s1114, 1
    %1116 = vsyncpa [#allocation4], 1
    %s1117 = scalar_lea.sflag [#allocation4], 1
    %1118 = vsyncpa %s1117, 1

</llo_original>
